<compile_context>
chip_gen: v7x
topology: tpu7x:2x2x1
jax: 0.10.0
libtpu: 0.0.40
codegen_flags: <defaults>
</compile_context>

<pallas_src>
import jax
import jax.numpy as jnp
from jax.experimental import pallas as pl
from jax.experimental.pallas import tpu as pltpu


def _centered_kernel(x_ref, o_ref):
    x = x_ref[...]
    y = jnp.where(x < 0, x * 0.01, jnp.where(x > 1, x * 0.01 + 0.99, x))
    o_ref[...] = y.astype(o_ref.dtype)


_LANE_CANDIDATES = (8192, 4096, 2048, 1024, 512, 256, 128)
_TARGET_BLOCK_BYTES = 8 * 1024 * 1024    # ~8 MiB/block: amortizes per-step cost
_MIN_SPLIT_BYTES = 2 * 1024 * 1024       # above this, force >=2 blocks (v7x 2 TCs)
_VMEM_MARGIN_BYTES = 2 * 1024 * 1024     # headroom for compiler-internal scratch
_VMEM_FLOOR_BYTES = 4 * 1024 * 1024
_VMEM_CAP_BYTES = 48 * 1024 * 1024       # safe on v5e/v6e (128 MiB) and v7x (64 MiB)


def _min_sublane(dtype) -> int:
    itemsize = jnp.dtype(dtype).itemsize
    if itemsize >= 4:
        return 8
    if itemsize == 2:
        return 16
    return 32


def _round_up(v: int, m: int) -> int:
    return -(-v // m) * m


def _round_down(v: int, m: int) -> int:
    return (v // m) * m


def _compiler_params(block_bytes: int) -> pltpu.CompilerParams:
    # Live VMEM ~= 2 (double-buffer) x 2 (in + out) x block.
    vmem = 4 * block_bytes + _VMEM_MARGIN_BYTES
    vmem = max(_VMEM_FLOOR_BYTES, min(_VMEM_CAP_BYTES, vmem))
    return pltpu.CompilerParams(
        dimension_semantics=("parallel",),
        vmem_limit_bytes=int(vmem),
    )


def centered_layer(x: jax.Array) -> jax.Array:
    """CenteredLayer forward, elementwise, via a Pallas TPU kernel."""
    orig_shape = x.shape
    dtype = x.dtype
    if not jnp.issubdtype(dtype, jnp.floating):
        # TODO(synk): the PyTorch in-place masked updates are ill-defined for
        # integer/fp8 inputs after float promotion; restrict to float dtypes.
        raise TypeError(f"centered_layer requires a floating dtype, got {dtype}")

    total = int(x.size)
    if total == 0:
        return x
    itemsize = jnp.dtype(dtype).itemsize
    total_bytes = total * itemsize
    sublane = _min_sublane(dtype)
    cost = pl.CostEstimate(
        flops=5 * total, transcendentals=0, bytes_accessed=2 * total_bytes
    )

    # Widest lane extent (multiple of 128) that exactly divides the element
    # count -> reshape is a free metadata change, no pad / slice copies.
    lane = None
    for cand in _LANE_CANDIDATES:
        if total >= cand and total % cand == 0:
            lane = cand
            break

    x_flat = jnp.ravel(x)  # contiguous reshape: no data movement

    if lane is None:
        # 1-D path for sizes that are not a multiple of 128: cdiv grid with a
        # ragged (Pallas-masked) last block. No zero-pad, no post-slice copy.
        granule = 1024  # multiple of 128 -> legal interior block size
        if total <= granule:
            block = total  # single full-extent block (exempt from 128 rule)
        else:
            block = max(granule, _round_down(_TARGET_BLOCK_BYTES // itemsize, granule))
            if total_bytes >= _MIN_SPLIT_BYTES:
                half = _round_up(pl.cdiv(total, 2), granule)
                if half < total:
                    block = min(block, half)   # guarantee >= 2 grid blocks
            if block >= total:
                block = total                  # single full-extent block
        grid = (pl.cdiv(total, block),)
        out_flat = pl.pallas_call(
            _centered_kernel,
            out_shape=jax.ShapeDtypeStruct((total,), dtype),
            grid_spec=pltpu.PrefetchScalarGridSpec(
                num_scalar_prefetch=0,
                grid=grid,
                in_specs=[pl.BlockSpec((block,), lambda i: (i,))],
                out_specs=pl.BlockSpec((block,), lambda i: (i,)),
            ),
            compiler_params=_compiler_params(block * itemsize),
            cost_estimate=cost,
        )(x_flat)
        return out_flat.reshape(orig_shape)

    # 2-D lane-dense path.
    rows = total // lane
    x2d = x_flat.reshape(rows, lane)
    row_bytes = lane * itemsize

    target_rows = max(sublane, _TARGET_BLOCK_BYTES // row_bytes)
    block_rows = max(sublane, _round_down(target_rows, sublane))
    if total_bytes >= _MIN_SPLIT_BYTES and rows > sublane:
        half = _round_up(pl.cdiv(rows, 2), sublane)
        if half < rows:
            block_rows = min(block_rows, half)  # guarantee >= 2 grid blocks
    if block_rows >= rows:
        block_rows = rows  # single full-extent block (exempt from (8,128) rule)

    grid = (pl.cdiv(rows, block_rows),)
    out2d = pl.pallas_call(
        _centered_kernel,
        out_shape=jax.ShapeDtypeStruct((rows, lane), dtype),
        grid_spec=pltpu.PrefetchScalarGridSpec(
            num_scalar_prefetch=0,
            grid=grid,
            in_specs=[pl.BlockSpec((block_rows, lane), lambda i: (i, 0))],
            out_specs=pl.BlockSpec((block_rows, lane), lambda i: (i, 0)),
        ),
        compiler_params=_compiler_params(block_rows * row_bytes),
        cost_estimate=cost,
    )(x2d)
    return out2d.reshape(orig_shape)


def centered_layer_ref(x: jax.Array) -> jax.Array:
    return jnp.where(x < 0, x * 0.01, jnp.where(x > 1, x * 0.01 + 0.99, x))


if __name__ == "__main__":
    key = jax.random.PRNGKey(0)

    # NCHW input like the PyTorch module; values spread so all branches hit.
    x = jax.random.normal(key, (2, 4, 16, 16), dtype=jnp.float32) * 2.0
    y = jax.block_until_ready(centered_layer(x))
    y_ref = centered_layer_ref(x)
    assert y.shape == x.shape and y.dtype == x.dtype
    assert jnp.allclose(y, y_ref, atol=1e-6, rtol=1e-6)

    # Awkward (non-multiple-of-128) size exercises the 1-D fallback path.
    x2 = jax.random.normal(jax.random.PRNGKey(1), (3, 5, 7), dtype=jnp.float32) * 3.0
    y2 = jax.block_until_ready(centered_layer(x2))
    assert jnp.allclose(y2, centered_layer_ref(x2), atol=1e-6, rtol=1e-6)

    # Larger non-multiple-of-128 size (still small), 1-D full-block path.
    x3 = jax.random.normal(jax.random.PRNGKey(2), (5, 1000), dtype=jnp.float32) * 2.5
    y3 = jax.block_until_ready(centered_layer(x3))
    assert jnp.allclose(y3, centered_layer_ref(x3), atol=1e-6, rtol=1e-6)

    # bf16 path (matches bf16 reference; sublane granule 16).
    x4 = jax.random.normal(jax.random.PRNGKey(3), (4, 8, 32), dtype=jnp.bfloat16) * 2
    y4 = jax.block_until_ready(centered_layer(x4))
    assert jnp.allclose(
        y4.astype(jnp.float32), centered_layer_ref(x4).astype(jnp.float32),
        atol=1e-2, rtol=1e-2,
    )

    print("KERNEL_OK")
</pallas_src>

<mosaic_0001>
module attributes {stable_mosaic.version = 11 : i64} {
  func.func @_centered_kernel(%arg0: i32, %arg1: memref<1x2048xf32, #tpu.memory_space<vmem>>, %arg2: memref<1x2048xf32, #tpu.memory_space<vmem>>) attributes {dimension_semantics = [#tpu.dimension_semantics<parallel>], iteration_bounds = array<i64: 1>, scalar_prefetch = 0 : i64, scratch_operands = 0 : i64, tpu.core_type = #tpu.core_type<tc>, window_params = [{transform_indices = @transform_0, window_bounds = array<i64: 1, 2048>}, {transform_indices = @transform_1, window_bounds = array<i64: 1, 2048>}]} {
    %c0 = arith.constant 0 : index
    %c0_0 = arith.constant 0 : index
    %0 = vector.load %arg1[%c0, %c0_0] : memref<1x2048xf32, #tpu.memory_space<vmem>>, vector<1x2048xf32>
    %cst = arith.constant 0.000000e+00 : f32
    %1 = vector.broadcast %cst : f32 to vector<1x2048xf32>
    %2 = arith.cmpf olt, %0, %1 : vector<1x2048xf32>
    %cst_1 = arith.constant 0.00999999977 : f32
    %3 = vector.broadcast %cst_1 : f32 to vector<1x2048xf32>
    %4 = arith.mulf %0, %3 : vector<1x2048xf32>
    %cst_2 = arith.constant 1.000000e+00 : f32
    %5 = vector.broadcast %cst_2 : f32 to vector<1x2048xf32>
    %6 = arith.cmpf ogt, %0, %5 : vector<1x2048xf32>
    %cst_3 = arith.constant 0.00999999977 : f32
    %7 = vector.broadcast %cst_3 : f32 to vector<1x2048xf32>
    %8 = arith.mulf %0, %7 : vector<1x2048xf32>
    %cst_4 = arith.constant 9.900000e-01 : f32
    %9 = vector.broadcast %cst_4 : f32 to vector<1x2048xf32>
    %10 = arith.addf %8, %9 : vector<1x2048xf32>
    %11 = arith.select %6, %10, %0 : vector<1x2048xi1>, vector<1x2048xf32>
    %12 = arith.select %2, %4, %11 : vector<1x2048xi1>, vector<1x2048xf32>
    %c0_5 = arith.constant 0 : index
    %c0_6 = arith.constant 0 : index
    %13 = vector.load %arg2[%c0_5, %c0_6] : memref<1x2048xf32, #tpu.memory_space<vmem>>, vector<1x2048xf32>
    tpu.vector_store %arg2[%c0_5, %c0_6], %12 {strides = array<i32>} : memref<1x2048xf32, #tpu.memory_space<vmem>>, vector<1x2048xf32>,
    return
  }
  func.func @transform_0(%arg0: i32) -> (i32, i32) {
    %c0_i32 = arith.constant 0 : i32
    %c0_i32_0 = arith.constant 0 : i32
    return %arg0, %c0_i32 : i32, i32
  }
  func.func @transform_1(%arg0: i32) -> (i32, i32) {
    %c0_i32 = arith.constant 0 : i32
    %c0_i32_0 = arith.constant 0 : i32
    return %arg0, %c0_i32 : i32, i32
  }
}

</mosaic_0001>

<llo_original>
// kernel: tpu_custom_call.1
$region0: #{tpu_custom_call.1}
  #allocation0 [shape = 'u32[]', space=smem, size = 0x4, offset = 0x4, fixed_abs, tag = 'smem constant byte address 0x4 - core index']
  #allocation1 [shape = 'u32[144,128]{1,0:T(1,128)}', space=vmem, size = 0x12000, scoped, tag = 'internal scratch']
  %s0 = inlined_call_operand.hbm [shape: f32[1,2048], index: 0, kind: input, shape index: {}]
  %s1 = inlined_call_operand.hbm [shape: f32[1,2048], index: 1, kind: output, shape index: {}]
  %s2 = sld [smem:[#allocation0]]
  $region18: #{tpu_custom_call.1} parent=0
    _
  %s4 = ssub.s32 1, %s2
  %s5 = scalar_select 0, %s4, %s2
  $region1: #{tpu_custom_call.1} parent=0
    #allocation2 [shape = 'u8[8192]{0}', space=vmem, size = 0x2000, scoped, tag = 'input window, operand 0, single buffered']
    #allocation3 [shape = 's32[1]{0}', space=sflag, size = 0x4, scoped, tag = 'scoped memory for tpu_custom_call.1']
    #allocation4 [shape = 's32[1]{0}', space=sflag, size = 0x4, scoped, tag = 'scoped memory for tpu_custom_call.1']
    #allocation5 [shape = 'u8[8192]{0}', space=vmem, size = 0x2000, scoped, tag = 'output window, operand 0, single buffered']
    %6 = vsyncpa [#allocation3], 0
    %7 = vsyncpa [#allocation4], 0
    // Predicated region
    $region2: #{tpu_custom_call.1} parent=1 // pred_check
      _
    $region3: #{tpu_custom_call.1} parent=1 // pred_check_branch
      %9 = sbr.rel (0) target = $region5
    $region4: #{tpu_custom_call.1} parent=1 // pred_region
      %s11 = ssub.s32 256, 256
      %12 = vsyncadd [#allocation3], %s11
      %s14 = sshll.u32 [#allocation2], 4
      %s15 = int_to_ptr.vmem [resolvable:$true] %s14
      %17 = dma.hbm_to_vmem [thread:$0]  %s0, 256, %s15, [#allocation3]
    $region5: #{tpu_custom_call.1} parent=1 // pred_fallthru
      _
    // Predicated region
    $region6: #{tpu_custom_call.1} parent=1 // pred_check
      _
    $region7: #{tpu_custom_call.1} parent=1 // pred_check_branch
      %19 = sbr.rel (0) target = $region9
    $region8: #{tpu_custom_call.1} parent=1 // pred_region
      %20 = dma.done [#allocation3], 256
    $region9: #{tpu_custom_call.1} parent=1 // pred_fallthru
      _
    %v21 = vld [vmem:[#allocation2] sm:$0xff]
    %v22 = vld [vmem:[#allocation2 + $0x8] sm:$0xff]
    %vm23 = vcmp.lt.f32.partialorder %v21, 0.0
    %vm24 = vcmp.lt.f32.partialorder %v22, 0.0
    %v25 = vmul.f32 %v21, 0.01
    %v26 = vmul.f32 %v22, 0.01
    %vm27 = vcmp.gt.f32.partialorder %v21, 1.0
    %vm28 = vcmp.gt.f32.partialorder %v22, 1.0
    %v29 = vadd.f32 %v25, 0.99
    %v30 = vadd.f32 %v26, 0.99
    %v31 = vsel %vm27, %v29, %v21
    %v32 = vsel %vm28, %v30, %v22
    %v33 = vsel %vm23, %v25, %v31
    %v34 = vsel %vm24, %v26, %v32
    %35 = vst [vmem:[#allocation5] sm:$0xff] %v33
    %36 = vst [vmem:[#allocation5 + $0x8] sm:$0xff] %v34
    // Predicated region
    $region10: #{tpu_custom_call.1} parent=1 // pred_check
      _
    $region11: #{tpu_custom_call.1} parent=1 // pred_check_branch
      %38 = sbr.rel (0) target = $region13
    $region12: #{tpu_custom_call.1} parent=1 // pred_region
      %s40 = ssub.s32 256, 256
      %41 = vsyncadd [#allocation4], %s40
      %s43 = sshll.u32 [#allocation5], 4
      %s44 = int_to_ptr.vmem [resolvable:$true] %s43
      %46 = dma.vmem_to_hbm [thread:$0]  %s44, 256, %s1, [#allocation4]
    $region13: #{tpu_custom_call.1} parent=1 // pred_fallthru
      _
    // Predicated region
    $region14: #{tpu_custom_call.1} parent=1 // pred_check
      _
    $region15: #{tpu_custom_call.1} parent=1 // pred_check_branch
      %48 = sbr.rel (0) target = $region17
    $region16: #{tpu_custom_call.1} parent=1 // pred_region
      %49 = dma.done [#allocation4], 256
    $region17: #{tpu_custom_call.1} parent=1 // pred_fallthru
      _
    %50 = vsyncpa [#allocation3], 1
    %51 = vsyncpa [#allocation4], 1

</llo_original>
